<compile_context>
chip_gen: v7x
topology: tpu7x:2x2x1
jax: 0.10.0
libtpu: 0.0.40
codegen_flags: <defaults>
</compile_context>

<pallas_src>
import functools

import jax
import jax.numpy as jnp
from jax.experimental import pallas as pl
from jax.experimental.pallas import tpu as pltpu

SELU_ALPHA = 1.6732632423543772848170429916717
SELU_SCALE = 1.0507009873554804934193349852946

LANE = 128      # vreg lane width
SUBLANE = 8     # vreg sublane depth (f32)


def _round_up(x, m):
    return (x + m - 1) // m * m


def _selu_f32(y):
    # exp(min(y, 0)) avoids spurious inf on the (discarded) positive branch.
    return SELU_SCALE * jnp.where(y > 0, y, SELU_ALPHA * (jnp.exp(jnp.minimum(y, 0.0)) - 1.0))


# --------------------------- fused DSNN kernel ------------------------------------
def _dsnn_kernel(n_layers, compute_dtype, x_ref, *refs):
    """Whole DSNN forward for one (TM, in_pad) row tile.

    refs = (w0, b0, w1, b1, ..., w_{L-1}, b_{L-1}, out_ref).
    Hidden layers apply SELU; the last layer is the linear output layer.
    """
    o_ref = refs[-1]
    params = refs[:-1]

    x = x_ref[...]                                     # (TM, K0_pad), compute_dtype
    for l in range(n_layers):                          # statically unrolled
        w = params[2 * l][...]                         # (Kl_pad, Nl_pad), compute_dtype
        b = params[2 * l + 1][...]                     # (1, Nl_pad), float32
        y = jnp.dot(x, w, preferred_element_type=jnp.float32) + b   # f32 accumulate
        if l < n_layers - 1:
            x = _selu_f32(y).astype(compute_dtype)
        else:
            o_ref[...] = y.astype(o_ref.dtype)         # linear output, lane-dense store


# --------------------------- wrapper ----------------------------------------------
def dsnn_forward(x, params, *, compute_dtype=jnp.bfloat16, block_rows=512):
    """Run the DSNN forward. `params` is a list of (weight(in,out), bias(out,)) per layer,
    hidden layers first, output layer last. Accepts (M, F) or (F,) input like the torch module."""
    squeeze = (x.ndim == 1)
    if squeeze:
        x = x[None, :]
    m, n_in = x.shape
    n_layers = len(params)
    n_out = params[-1][0].shape[1]

    # Lane-dense / sublane-aligned padding.
    in_pad = _round_up(n_in, LANE)
    m8 = _round_up(m, SUBLANE)
    tm = min(block_rows, m8)
    m_pad = _round_up(m8, tm)

    x_p = jnp.zeros((m_pad, in_pad), compute_dtype).at[:m, :n_in].set(x.astype(compute_dtype))

    flat = []
    in_specs = [pl.BlockSpec((tm, in_pad), lambda i: (i, 0))]
    k_pad = in_pad
    for (w, b) in params:
        k, n = w.shape
        n_pad = _round_up(n, LANE)
        w_p = jnp.zeros((k_pad, n_pad), compute_dtype).at[:k, :n].set(w.astype(compute_dtype))
        b_p = jnp.zeros((1, n_pad), jnp.float32).at[:, :n].set(b.astype(jnp.float32).reshape(1, n))
        flat += [w_p, b_p]
        # Constant block index -> weight/bias blocks stay resident in VMEM across the
        # row grid (no re-DMA between grid steps).
        in_specs += [pl.BlockSpec((k_pad, n_pad), lambda i: (0, 0)),
                     pl.BlockSpec((1, n_pad), lambda i: (0, 0))]
        k_pad = n_pad
    out_pad = k_pad

    out = pl.pallas_call(
        functools.partial(_dsnn_kernel, n_layers, compute_dtype),
        out_shape=jax.ShapeDtypeStruct((m_pad, out_pad), jnp.float32),
        grid=(m_pad // tm,),
        in_specs=in_specs,
        out_specs=pl.BlockSpec((tm, out_pad), lambda i: (i, 0)),
        compiler_params=pltpu.CompilerParams(
            dimension_semantics=("parallel",),          # shard batch tiles across TCs (v7x)
            vmem_limit_bytes=64 * 1024 * 1024,
        ),
    )(x_p, *flat)

    out = out[:m, :n_out]
    return out[0] if squeeze else out


# --------------------------- reference & init -------------------------------------
def dsnn_reference(x, params):
    h = x.astype(jnp.float32)
    if h.ndim == 1:
        h = h[None, :]
    for i, (w, b) in enumerate(params):
        h = h @ w + b
        if i < len(params) - 1:
            h = SELU_SCALE * jnp.where(h > 0, h, SELU_ALPHA * (jnp.exp(jnp.minimum(h, 0.0)) - 1.0))
    return h


def init_params(key, n_input_features, n_hidden_layers, n_hidden_units, n_output_features):
    """Matches the torch module: weight ~ N(0, sqrt(1/fan_in)), bias ~ default Linear init.
    Weights stored as (in, out) (transposed vs torch's (out, in))."""
    params = []
    fan_in = n_input_features
    dims = [n_hidden_units] * n_hidden_layers + [n_output_features]
    for n_units in dims:
        key, kw, kb = jax.random.split(key, 3)
        std = float(fan_in) ** -0.5
        w = jax.random.normal(kw, (fan_in, n_units), jnp.float32) * std
        b = jax.random.uniform(kb, (n_units,), jnp.float32, -std, std)
        params.append((w, b))
        fan_in = n_units
    return params


if __name__ == "__main__":
    n_samples = 16
    n_input_features = 32
    n_hidden_layers = 3
    n_hidden_units = 64
    n_output_features = 5

    key = jax.random.PRNGKey(0)
    k_x, k_p = jax.random.split(key)
    x = jax.random.normal(k_x, (n_samples, n_input_features), jnp.float32)
    params = init_params(k_p, n_input_features, n_hidden_layers, n_hidden_units,
                         n_output_features)

    out = dsnn_forward(x, params)
    out = jax.block_until_ready(out)
    assert out.shape == (n_samples, n_output_features)
    assert bool(jnp.all(jnp.isfinite(out)))

    # Correctness vs plain-JAX f32 reference (kernel computes in bf16 w/ f32 accumulation).
    ref = dsnn_reference(x, params)
    max_err = float(jnp.max(jnp.abs(out - ref)))
    assert max_err < 1e-1, f"max abs error {max_err}"

    # 1-D input path, as supported by the torch forward().
    out1 = jax.block_until_ready(dsnn_forward(x[0], params))
    assert out1.shape == (n_output_features,)

    print("KERNEL_OK")
</pallas_src>

<mosaic_0001>
module attributes {stable_mosaic.version = 11 : i64} {
  func.func @_dsnn_kernel(%arg0: i32, %arg1: memref<16x128xbf16, #tpu.memory_space<vmem>>, %arg2: memref<128x128xbf16, #tpu.memory_space<vmem>>, %arg3: memref<1x128xf32, #tpu.memory_space<vmem>>, %arg4: memref<128x128xbf16, #tpu.memory_space<vmem>>, %arg5: memref<1x128xf32, #tpu.memory_space<vmem>>, %arg6: memref<128x128xbf16, #tpu.memory_space<vmem>>, %arg7: memref<1x128xf32, #tpu.memory_space<vmem>>, %arg8: memref<128x128xbf16, #tpu.memory_space<vmem>>, %arg9: memref<1x128xf32, #tpu.memory_space<vmem>>, %arg10: memref<16x128xf32, #tpu.memory_space<vmem>>) attributes {dimension_semantics = [#tpu.dimension_semantics<parallel>], iteration_bounds = array<i64: 1>, scalar_prefetch = 0 : i64, scratch_operands = 0 : i64, tpu.core_type = #tpu.core_type<tc>, window_params = [{transform_indices = @transform_0, window_bounds = array<i64: 16, 128>}, {pipeline_mode = #tpu.pipeline_mode<synchronous>, transform_indices = @transform_1, window_bounds = array<i64: 128, 128>}, {pipeline_mode = #tpu.pipeline_mode<synchronous>, transform_indices = @transform_2, window_bounds = array<i64: 1, 128>}, {pipeline_mode = #tpu.pipeline_mode<synchronous>, transform_indices = @transform_3, window_bounds = array<i64: 128, 128>}, {pipeline_mode = #tpu.pipeline_mode<synchronous>, transform_indices = @transform_4, window_bounds = array<i64: 1, 128>}, {pipeline_mode = #tpu.pipeline_mode<synchronous>, transform_indices = @transform_5, window_bounds = array<i64: 128, 128>}, {pipeline_mode = #tpu.pipeline_mode<synchronous>, transform_indices = @transform_6, window_bounds = array<i64: 1, 128>}, {pipeline_mode = #tpu.pipeline_mode<synchronous>, transform_indices = @transform_7, window_bounds = array<i64: 128, 128>}, {pipeline_mode = #tpu.pipeline_mode<synchronous>, transform_indices = @transform_8, window_bounds = array<i64: 1, 128>}, {transform_indices = @transform_9, window_bounds = array<i64: 16, 128>}]} {
    %c0 = arith.constant 0 : index
    %c0_0 = arith.constant 0 : index
    %0 = vector.load %arg1[%c0, %c0_0] : memref<16x128xbf16, #tpu.memory_space<vmem>>, vector<16x128xbf16>
    %c0_1 = arith.constant 0 : index
    %c0_2 = arith.constant 0 : index
    %1 = vector.load %arg2[%c0_1, %c0_2] : memref<128x128xbf16, #tpu.memory_space<vmem>>, vector<128x128xbf16>
    %c0_3 = arith.constant 0 : index
    %c0_4 = arith.constant 0 : index
    %2 = vector.load %arg3[%c0_3, %c0_4] : memref<1x128xf32, #tpu.memory_space<vmem>>, vector<1x128xf32>
    %cst = arith.constant dense<0.000000e+00> : vector<16x128xf32>
    %3 = tpu.matmul %0, %1, %cst {dimension_numbers = #tpu.dot_dimension_numbers<[1], [0], [0], [1], [0, 0, 1, 1], [], []>} : vector<16x128xbf16>, vector<128x128xbf16>, vector<16x128xf32> -> vector<16x128xf32>
    %4 = vector.broadcast %2 : vector<1x128xf32> to vector<16x128xf32>
    %5 = arith.addf %3, %4 : vector<16x128xf32>
    %cst_5 = arith.constant 0.000000e+00 : f32
    %6 = vector.broadcast %cst_5 : f32 to vector<16x128xf32>
    %7 = arith.cmpf ogt, %5, %6 : vector<16x128xf32>
    %cst_6 = arith.constant 0.000000e+00 : f32
    %8 = vector.broadcast %cst_6 : f32 to vector<16x128xf32>
    %9 = arith.minimumf %5, %8 : vector<16x128xf32>
    %10 = math.exp %9 : vector<16x128xf32>
    %cst_7 = arith.constant 1.000000e+00 : f32
    %11 = vector.broadcast %cst_7 : f32 to vector<16x128xf32>
    %12 = arith.subf %10, %11 : vector<16x128xf32>
    %cst_8 = arith.constant 1.67326319 : f32
    %13 = vector.broadcast %cst_8 : f32 to vector<16x128xf32>
    %14 = arith.mulf %13, %12 : vector<16x128xf32>
    %15 = arith.select %7, %5, %14 : vector<16x128xi1>, vector<16x128xf32>
    %cst_9 = arith.constant 1.05070102 : f32
    %16 = vector.broadcast %cst_9 : f32 to vector<16x128xf32>
    %17 = arith.mulf %16, %15 : vector<16x128xf32>
    %18 = arith.truncf %17 : vector<16x128xf32> to vector<16x128xbf16>
    %c0_10 = arith.constant 0 : index
    %c0_11 = arith.constant 0 : index
    %19 = vector.load %arg4[%c0_10, %c0_11] : memref<128x128xbf16, #tpu.memory_space<vmem>>, vector<128x128xbf16>
    %c0_12 = arith.constant 0 : index
    %c0_13 = arith.constant 0 : index
    %20 = vector.load %arg5[%c0_12, %c0_13] : memref<1x128xf32, #tpu.memory_space<vmem>>, vector<1x128xf32>
    %cst_14 = arith.constant dense<0.000000e+00> : vector<16x128xf32>
    %21 = tpu.matmul %18, %19, %cst_14 {dimension_numbers = #tpu.dot_dimension_numbers<[1], [0], [0], [1], [0, 0, 1, 1], [], []>} : vector<16x128xbf16>, vector<128x128xbf16>, vector<16x128xf32> -> vector<16x128xf32>
    %22 = vector.broadcast %20 : vector<1x128xf32> to vector<16x128xf32>
    %23 = arith.addf %21, %22 : vector<16x128xf32>
    %cst_15 = arith.constant 0.000000e+00 : f32
    %24 = vector.broadcast %cst_15 : f32 to vector<16x128xf32>
    %25 = arith.cmpf ogt, %23, %24 : vector<16x128xf32>
    %cst_16 = arith.constant 0.000000e+00 : f32
    %26 = vector.broadcast %cst_16 : f32 to vector<16x128xf32>
    %27 = arith.minimumf %23, %26 : vector<16x128xf32>
    %28 = math.exp %27 : vector<16x128xf32>
    %cst_17 = arith.constant 1.000000e+00 : f32
    %29 = vector.broadcast %cst_17 : f32 to vector<16x128xf32>
    %30 = arith.subf %28, %29 : vector<16x128xf32>
    %cst_18 = arith.constant 1.67326319 : f32
    %31 = vector.broadcast %cst_18 : f32 to vector<16x128xf32>
    %32 = arith.mulf %31, %30 : vector<16x128xf32>
    %33 = arith.select %25, %23, %32 : vector<16x128xi1>, vector<16x128xf32>
    %cst_19 = arith.constant 1.05070102 : f32
    %34 = vector.broadcast %cst_19 : f32 to vector<16x128xf32>
    %35 = arith.mulf %34, %33 : vector<16x128xf32>
    %36 = arith.truncf %35 : vector<16x128xf32> to vector<16x128xbf16>
    %c0_20 = arith.constant 0 : index
    %c0_21 = arith.constant 0 : index
    %37 = vector.load %arg6[%c0_20, %c0_21] : memref<128x128xbf16, #tpu.memory_space<vmem>>, vector<128x128xbf16>
    %c0_22 = arith.constant 0 : index
    %c0_23 = arith.constant 0 : index
    %38 = vector.load %arg7[%c0_22, %c0_23] : memref<1x128xf32, #tpu.memory_space<vmem>>, vector<1x128xf32>
    %cst_24 = arith.constant dense<0.000000e+00> : vector<16x128xf32>
    %39 = tpu.matmul %36, %37, %cst_24 {dimension_numbers = #tpu.dot_dimension_numbers<[1], [0], [0], [1], [0, 0, 1, 1], [], []>} : vector<16x128xbf16>, vector<128x128xbf16>, vector<16x128xf32> -> vector<16x128xf32>
    %40 = vector.broadcast %38 : vector<1x128xf32> to vector<16x128xf32>
    %41 = arith.addf %39, %40 : vector<16x128xf32>
    %cst_25 = arith.constant 0.000000e+00 : f32
    %42 = vector.broadcast %cst_25 : f32 to vector<16x128xf32>
    %43 = arith.cmpf ogt, %41, %42 : vector<16x128xf32>
    %cst_26 = arith.constant 0.000000e+00 : f32
    %44 = vector.broadcast %cst_26 : f32 to vector<16x128xf32>
    %45 = arith.minimumf %41, %44 : vector<16x128xf32>
    %46 = math.exp %45 : vector<16x128xf32>
    %cst_27 = arith.constant 1.000000e+00 : f32
    %47 = vector.broadcast %cst_27 : f32 to vector<16x128xf32>
    %48 = arith.subf %46, %47 : vector<16x128xf32>
    %cst_28 = arith.constant 1.67326319 : f32
    %49 = vector.broadcast %cst_28 : f32 to vector<16x128xf32>
    %50 = arith.mulf %49, %48 : vector<16x128xf32>
    %51 = arith.select %43, %41, %50 : vector<16x128xi1>, vector<16x128xf32>
    %cst_29 = arith.constant 1.05070102 : f32
    %52 = vector.broadcast %cst_29 : f32 to vector<16x128xf32>
    %53 = arith.mulf %52, %51 : vector<16x128xf32>
    %54 = arith.truncf %53 : vector<16x128xf32> to vector<16x128xbf16>
    %c0_30 = arith.constant 0 : index
    %c0_31 = arith.constant 0 : index
    %55 = vector.load %arg8[%c0_30, %c0_31] : memref<128x128xbf16, #tpu.memory_space<vmem>>, vector<128x128xbf16>
    %c0_32 = arith.constant 0 : index
    %c0_33 = arith.constant 0 : index
    %56 = vector.load %arg9[%c0_32, %c0_33] : memref<1x128xf32, #tpu.memory_space<vmem>>, vector<1x128xf32>
    %cst_34 = arith.constant dense<0.000000e+00> : vector<16x128xf32>
    %57 = tpu.matmul %54, %55, %cst_34 {dimension_numbers = #tpu.dot_dimension_numbers<[1], [0], [0], [1], [0, 0, 1, 1], [], []>} : vector<16x128xbf16>, vector<128x128xbf16>, vector<16x128xf32> -> vector<16x128xf32>
    %58 = vector.broadcast %56 : vector<1x128xf32> to vector<16x128xf32>
    %59 = arith.addf %57, %58 : vector<16x128xf32>
    %c0_35 = arith.constant 0 : index
    %c0_36 = arith.constant 0 : index
    %60 = vector.load %arg10[%c0_35, %c0_36] : memref<16x128xf32, #tpu.memory_space<vmem>>, vector<16x128xf32>
    tpu.vector_store %arg10[%c0_35, %c0_36], %59 {strides = array<i32>} : memref<16x128xf32, #tpu.memory_space<vmem>>, vector<16x128xf32>,
    return
  }
  func.func @transform_0(%arg0: i32) -> (i32, i32) {
    %c0_i32 = arith.constant 0 : i32
    %c0_i32_0 = arith.constant 0 : i32
    return %arg0, %c0_i32 : i32, i32
  }
  func.func @transform_1(%arg0: i32) -> (i32, i32) {
    %c0_i32 = arith.constant 0 : i32
    %c0_i32_0 = arith.constant 0 : i32
    %c0_i32_1 = arith.constant 0 : i32
    return %c0_i32, %c0_i32_0 : i32, i32
  }
  func.func @transform_2(%arg0: i32) -> (i32, i32) {
    %c0_i32 = arith.constant 0 : i32
    %c0_i32_0 = arith.constant 0 : i32
    %c0_i32_1 = arith.constant 0 : i32
    return %c0_i32, %c0_i32_0 : i32, i32
  }
  func.func @transform_3(%arg0: i32) -> (i32, i32) {
    %c0_i32 = arith.constant 0 : i32
    %c0_i32_0 = arith.constant 0 : i32
    %c0_i32_1 = arith.constant 0 : i32
    return %c0_i32, %c0_i32_0 : i32, i32
  }
  func.func @transform_4(%arg0: i32) -> (i32, i32) {
    %c0_i32 = arith.constant 0 : i32
    %c0_i32_0 = arith.constant 0 : i32
    %c0_i32_1 = arith.constant 0 : i32
    return %c0_i32, %c0_i32_0 : i32, i32
  }
  func.func @transform_5(%arg0: i32) -> (i32, i32) {
    %c0_i32 = arith.constant 0 : i32
    %c0_i32_0 = arith.constant 0 : i32
    %c0_i32_1 = arith.constant 0 : i32
    return %c0_i32, %c0_i32_0 : i32, i32
  }
  func.func @transform_6(%arg0: i32) -> (i32, i32) {
    %c0_i32 = arith.constant 0 : i32
    %c0_i32_0 = arith.constant 0 : i32
    %c0_i32_1 = arith.constant 0 : i32
    return %c0_i32, %c0_i32_0 : i32, i32
  }
  func.func @transform_7(%arg0: i32) -> (i32, i32) {
    %c0_i32 = arith.constant 0 : i32
    %c0_i32_0 = arith.constant 0 : i32
    %c0_i32_1 = arith.constant 0 : i32
    return %c0_i32, %c0_i32_0 : i32, i32
  }
  func.func @transform_8(%arg0: i32) -> (i32, i32) {
    %c0_i32 = arith.constant 0 : i32
    %c0_i32_0 = arith.constant 0 : i32
    %c0_i32_1 = arith.constant 0 : i32
    return %c0_i32, %c0_i32_0 : i32, i32
  }
  func.func @transform_9(%arg0: i32) -> (i32, i32) {
    %c0_i32 = arith.constant 0 : i32
    %c0_i32_0 = arith.constant 0 : i32
    return %arg0, %c0_i32 : i32, i32
  }
}

</mosaic_0001>

<llo_original>
// kernel: tpu_custom_call.1
$region0: #{tpu_custom_call.1}
  #allocation0 [shape = 'u32[]', space=smem, size = 0x4, offset = 0x4, fixed_abs, tag = 'smem constant byte address 0x4 - core index']
  #allocation1 [shape = 'u32[144,128]{1,0:T(1,128)}', space=vmem, size = 0x12000, scoped, tag = 'internal scratch']
  %s0 = inlined_call_operand.hbm [shape: bf16[16,128], index: 0, kind: input, shape index: {}]
  %s1 = inlined_call_operand.hbm [shape: bf16[128,128], index: 1, kind: input, shape index: {}]
  %s2 = inlined_call_operand.hbm [shape: f32[1,128], index: 2, kind: input, shape index: {}]
  %s3 = inlined_call_operand.hbm [shape: bf16[128,128], index: 3, kind: input, shape index: {}]
  %s4 = inlined_call_operand.hbm [shape: f32[1,128], index: 4, kind: input, shape index: {}]
  %s5 = inlined_call_operand.hbm [shape: bf16[128,128], index: 5, kind: input, shape index: {}]
  %s6 = inlined_call_operand.hbm [shape: f32[1,128], index: 6, kind: input, shape index: {}]
  %s7 = inlined_call_operand.hbm [shape: bf16[128,128], index: 7, kind: input, shape index: {}]
  %s8 = inlined_call_operand.hbm [shape: f32[1,128], index: 8, kind: input, shape index: {}]
  %s9 = inlined_call_operand.hbm [shape: f32[16,128], index: 9, kind: output, shape index: {}]
  %s10 = sld [smem:[#allocation0]]
  $region82: #{tpu_custom_call.1} parent=0
    _
  %s12 = ssub.s32 1, %s10
  %s13 = scalar_select 0, %s12, %s10
  $region1: #{tpu_custom_call.1} parent=0
    #allocation2 [shape = 'u8[4096]{0}', space=vmem, size = 0x1000, scoped, tag = 'input window, operand 0, single buffered']
    #allocation3 [shape = 's32[1]{0}', space=sflag, size = 0x4, scoped, tag = 'scoped memory for tpu_custom_call.1']
    #allocation4 [shape = 's32[1]{0}', space=sflag, size = 0x4, scoped, tag = 'scoped memory for tpu_custom_call.1']
    #allocation5 [shape = 'u8[32768]{0}', space=vmem, size = 0x8000, scoped, tag = 'input window, operand 1, single buffered']
    #allocation6 [shape = 's32[1]{0}', space=sflag, size = 0x4, scoped, tag = 'scoped memory for tpu_custom_call.1']
    #allocation7 [shape = 'u8[512]{0}', space=vmem, size = 0x400, scoped, tag = 'input window, operand 2, single buffered']
    #allocation8 [shape = 'u8[32768]{0}', space=vmem, size = 0x8000, scoped, tag = 'input window, operand 3, single buffered']
    #allocation9 [shape = 's32[1]{0}', space=sflag, size = 0x4, scoped, tag = 'scoped memory for tpu_custom_call.1']
    #allocation10 [shape = 'u8[512]{0}', space=vmem, size = 0x400, scoped, tag = 'input window, operand 4, single buffered']
    #allocation11 [shape = 'u8[32768]{0}', space=vmem, size = 0x8000, scoped, tag = 'input window, operand 5, single buffered']
    #allocation12 [shape = 's32[1]{0}', space=sflag, size = 0x4, scoped, tag = 'scoped memory for tpu_custom_call.1']
    #allocation13 [shape = 'u8[512]{0}', space=vmem, size = 0x400, scoped, tag = 'input window, operand 6, single buffered']
    #allocation14 [shape = 'u8[32768]{0}', space=vmem, size = 0x8000, scoped, tag = 'input window, operand 7, single buffered']
    #allocation15 [shape = 's32[1]{0}', space=sflag, size = 0x4, scoped, tag = 'scoped memory for tpu_custom_call.1']
    #allocation16 [shape = 'u8[512]{0}', space=vmem, size = 0x400, scoped, tag = 'input window, operand 8, single buffered']
    #allocation17 [shape = 'u8[8192]{0}', space=vmem, size = 0x2000, scoped, tag = 'output window, operand 0, single buffered']
    %14 = vsyncpa [#allocation3], 0
    %15 = vsyncpa [#allocation6], 0
    %16 = vsyncpa [#allocation9], 0
    %17 = vsyncpa [#allocation12], 0
    %18 = vsyncpa [#allocation15], 0
    %19 = vsyncpa [#allocation4], 0
    // Predicated region
    $region2: #{tpu_custom_call.1} parent=1 // pred_check
      _
    $region3: #{tpu_custom_call.1} parent=1 // pred_check_branch
      %21 = sbr.rel (0) target = $region5
    $region4: #{tpu_custom_call.1} parent=1 // pred_region
      %s23 = ssub.s32 128, 128
      %24 = vsyncadd [#allocation3], %s23
      %s25 = sshll.u32 [#allocation2], 4
      %s26 = int_to_ptr.vmem [resolvable:$true] %s25
      %31 = dma.hbm_to_vmem [thread:$0]  %s0, 128, %s26, [#allocation3], 64, 64, 4
    $region5: #{tpu_custom_call.1} parent=1 // pred_fallthru
      _
    // Predicated region
    $region6: #{tpu_custom_call.1} parent=1 // pred_check
      _
    $region7: #{tpu_custom_call.1} parent=1 // pred_check_branch
      %33 = sbr.rel (0) target = $region9
    $region8: #{tpu_custom_call.1} parent=1 // pred_region
      %s35 = ssub.s32 1024, 1024
      %36 = vsyncadd [#allocation6], %s35
      %s37 = sshll.u32 [#allocation5], 4
      %s38 = int_to_ptr.vmem [resolvable:$true] %s37
      %43 = dma.hbm_to_vmem [thread:$0]  %s1, 1024, %s38, [#allocation6], 64, 64, 4
    $region9: #{tpu_custom_call.1} parent=1 // pred_fallthru
      _
    // Predicated region
    $region10: #{tpu_custom_call.1} parent=1 // pred_check
      _
    $region11: #{tpu_custom_call.1} parent=1 // pred_check_branch
      %45 = sbr.rel (0) target = $region13
    $region12: #{tpu_custom_call.1} parent=1 // pred_region
      %s47 = ssub.s32 16, 16
      %48 = vsyncadd [#allocation6], %s47
      %s50 = sshll.u32 [#allocation7], 4
      %s51 = int_to_ptr.vmem [resolvable:$true] %s50
      %53 = dma.hbm_to_vmem [thread:$0]  %s2, 16, %s51, [#allocation6]
    $region13: #{tpu_custom_call.1} parent=1 // pred_fallthru
      _
    // Predicated region
    $region14: #{tpu_custom_call.1} parent=1 // pred_check
      _
    $region15: #{tpu_custom_call.1} parent=1 // pred_check_branch
      %55 = sbr.rel (0) target = $region17
    $region16: #{tpu_custom_call.1} parent=1 // pred_region
      %s57 = ssub.s32 1024, 1024
      %58 = vsyncadd [#allocation9], %s57
      %s59 = sshll.u32 [#allocation8], 4
      %s60 = int_to_ptr.vmem [resolvable:$true] %s59
      %65 = dma.hbm_to_vmem [thread:$0]  %s3, 1024, %s60, [#allocation9], 64, 64, 4
    $region17: #{tpu_custom_call.1} parent=1 // pred_fallthru
      _
    // Predicated region
    $region18: #{tpu_custom_call.1} parent=1 // pred_check
      _
    $region19: #{tpu_custom_call.1} parent=1 // pred_check_branch
      %67 = sbr.rel (0) target = $region21
    $region20: #{tpu_custom_call.1} parent=1 // pred_region
      %s69 = ssub.s32 16, 16
      %70 = vsyncadd [#allocation9], %s69
      %s72 = sshll.u32 [#allocation10], 4
      %s73 = int_to_ptr.vmem [resolvable:$true] %s72
      %75 = dma.hbm_to_vmem [thread:$0]  %s4, 16, %s73, [#allocation9]
    $region21: #{tpu_custom_call.1} parent=1 // pred_fallthru
      _
    // Predicated region
    $region22: #{tpu_custom_call.1} parent=1 // pred_check
      _
    $region23: #{tpu_custom_call.1} parent=1 // pred_check_branch
      %77 = sbr.rel (0) target = $region25
    $region24: #{tpu_custom_call.1} parent=1 // pred_region
      %s79 = ssub.s32 1024, 1024
      %80 = vsyncadd [#allocation12], %s79
      %s81 = sshll.u32 [#allocation11], 4
      %s82 = int_to_ptr.vmem [resolvable:$true] %s81
      %87 = dma.hbm_to_vmem [thread:$0]  %s5, 1024, %s82, [#allocation12], 64, 64, 4
    $region25: #{tpu_custom_call.1} parent=1 // pred_fallthru
      _
    // Predicated region
    $region26: #{tpu_custom_call.1} parent=1 // pred_check
      _
    $region27: #{tpu_custom_call.1} parent=1 // pred_check_branch
      %89 = sbr.rel (0) target = $region29
    $region28: #{tpu_custom_call.1} parent=1 // pred_region
      %s91 = ssub.s32 16, 16
      %92 = vsyncadd [#allocation12], %s91
      %s94 = sshll.u32 [#allocation13], 4
      %s95 = int_to_ptr.vmem [resolvable:$true] %s94
      %97 = dma.hbm_to_vmem [thread:$0]  %s6, 16, %s95, [#allocation12]
    $region29: #{tpu_custom_call.1} parent=1 // pred_fallthru
      _
    // Predicated region
    $region30: #{tpu_custom_call.1} parent=1 // pred_check
      _
    $region31: #{tpu_custom_call.1} parent=1 // pred_check_branch
      %99 = sbr.rel (0) target = $region33
    $region32: #{tpu_custom_call.1} parent=1 // pred_region
      %s101 = ssub.s32 1024, 1024
      %102 = vsyncadd [#allocation15], %s101
      %s103 = sshll.u32 [#allocation14], 4
      %s104 = int_to_ptr.vmem [resolvable:$true] %s103
      %109 = dma.hbm_to_vmem [thread:$0]  %s7, 1024, %s104, [#allocation15], 64, 64, 4
    $region33: #{tpu_custom_call.1} parent=1 // pred_fallthru
      _
    // Predicated region
    $region34: #{tpu_custom_call.1} parent=1 // pred_check
      _
    $region35: #{tpu_custom_call.1} parent=1 // pred_check_branch
      %111 = sbr.rel (0) target = $region37
    $region36: #{tpu_custom_call.1} parent=1 // pred_region
      %s113 = ssub.s32 16, 16
      %114 = vsyncadd [#allocation15], %s113
      %s116 = sshll.u32 [#allocation16], 4
      %s117 = int_to_ptr.vmem [resolvable:$true] %s116
      %119 = dma.hbm_to_vmem [thread:$0]  %s8, 16, %s117, [#allocation15]
    $region37: #{tpu_custom_call.1} parent=1 // pred_fallthru
      _
    // Predicated region
    $region38: #{tpu_custom_call.1} parent=1 // pred_check
      _
    $region39: #{tpu_custom_call.1} parent=1 // pred_check_branch
      %121 = sbr.rel (0) target = $region41
    $region40: #{tpu_custom_call.1} parent=1 // pred_region
      %122 = dma.done [#allocation3], 128
    $region41: #{tpu_custom_call.1} parent=1 // pred_fallthru
      _
    // Predicated region
    $region42: #{tpu_custom_call.1} parent=1 // pred_check
      _
    $region43: #{tpu_custom_call.1} parent=1 // pred_check_branch
      %124 = sbr.rel (0) target = $region45
    $region44: #{tpu_custom_call.1} parent=1 // pred_region
      %125 = dma.done [#allocation6], 1024
    $region45: #{tpu_custom_call.1} parent=1 // pred_fallthru
      _
    // Predicated region
    $region46: #{tpu_custom_call.1} parent=1 // pred_check
      _
    $region47: #{tpu_custom_call.1} parent=1 // pred_check_branch
      %127 = sbr.rel (0) target = $region49
    $region48: #{tpu_custom_call.1} parent=1 // pred_region
      %128 = dma.done [#allocation6], 16
    $region49: #{tpu_custom_call.1} parent=1 // pred_fallthru
      _
    // Predicated region
    $region50: #{tpu_custom_call.1} parent=1 // pred_check
      _
    $region51: #{tpu_custom_call.1} parent=1 // pred_check_branch
      %130 = sbr.rel (0) target = $region53
    $region52: #{tpu_custom_call.1} parent=1 // pred_region
      %131 = dma.done [#allocation9], 1024
    $region53: #{tpu_custom_call.1} parent=1 // pred_fallthru
      _
    // Predicated region
    $region54: #{tpu_custom_call.1} parent=1 // pred_check
      _
    $region55: #{tpu_custom_call.1} parent=1 // pred_check_branch
      %133 = sbr.rel (0) target = $region57
    $region56: #{tpu_custom_call.1} parent=1 // pred_region
      %134 = dma.done [#allocation9], 16
    $region57: #{tpu_custom_call.1} parent=1 // pred_fallthru
      _
    // Predicated region
    $region58: #{tpu_custom_call.1} parent=1 // pred_check
      _
    $region59: #{tpu_custom_call.1} parent=1 // pred_check_branch
      %136 = sbr.rel (0) target = $region61
    $region60: #{tpu_custom_call.1} parent=1 // pred_region
      %137 = dma.done [#allocation12], 1024
    $region61: #{tpu_custom_call.1} parent=1 // pred_fallthru
      _
    // Predicated region
    $region62: #{tpu_custom_call.1} parent=1 // pred_check
      _
    $region63: #{tpu_custom_call.1} parent=1 // pred_check_branch
      %139 = sbr.rel (0) target = $region65
    $region64: #{tpu_custom_call.1} parent=1 // pred_region
      %140 = dma.done [#allocation12], 16
    $region65: #{tpu_custom_call.1} parent=1 // pred_fallthru
      _
    // Predicated region
    $region66: #{tpu_custom_call.1} parent=1 // pred_check
      _
    $region67: #{tpu_custom_call.1} parent=1 // pred_check_branch
      %142 = sbr.rel (0) target = $region69
    $region68: #{tpu_custom_call.1} parent=1 // pred_region
      %143 = dma.done [#allocation15], 1024
    $region69: #{tpu_custom_call.1} parent=1 // pred_fallthru
      _
    // Predicated region
    $region70: #{tpu_custom_call.1} parent=1 // pred_check
      _
    $region71: #{tpu_custom_call.1} parent=1 // pred_check_branch
      %145 = sbr.rel (0) target = $region73
    $region72: #{tpu_custom_call.1} parent=1 // pred_region
      %146 = dma.done [#allocation15], 16
    $region73: #{tpu_custom_call.1} parent=1 // pred_fallthru
      _
    %v148 = vld [vmem:[#allocation2] sm:$0xf]
    %v149 = vld [vmem:[#allocation2 + $0x4] sm:$0xf]
    %v150 = vld [vmem:[#allocation5] sm:$0xf]
    %v151 = vld [vmem:[#allocation5 + $0x4] sm:$0xf]
    %v152 = vld [vmem:[#allocation5 + $0x8] sm:$0xf]
    %v153 = vld [vmem:[#allocation5 + $0xc] sm:$0xf]
    %v154 = vld [vmem:[#allocation5 + $0x10] sm:$0xf]
    %v155 = vld [vmem:[#allocation5 + $0x14] sm:$0xf]
    %v156 = vld [vmem:[#allocation5 + $0x18] sm:$0xf]
    %v157 = vld [vmem:[#allocation5 + $0x1c] sm:$0xf]
    %v158 = vld [vmem:[#allocation5 + $0x20] sm:$0xf]
    %v159 = vld [vmem:[#allocation5 + $0x24] sm:$0xf]
    %v160 = vld [vmem:[#allocation5 + $0x28] sm:$0xf]
    %v161 = vld [vmem:[#allocation5 + $0x2c] sm:$0xf]
    %v162 = vld [vmem:[#allocation5 + $0x30] sm:$0xf]
    %v163 = vld [vmem:[#allocation5 + $0x34] sm:$0xf]
    %v164 = vld [vmem:[#allocation5 + $0x38] sm:$0xf]
    %v165 = vld [vmem:[#allocation5 + $0x3c] sm:$0xf]
    %v166 = vld [vmem:[#allocation7] sm:$0x1]
    %v168 = vlaneseq
    %v169 = vshrl.u32 %v168, 7
    %v170 = vsub.s32 0, %v169
    %v171 = vrot.slane %v166, %v170
    %v175 = vunpack.c.l.b16 %v148
    %v176 = vunpack.c.l.b16 %v149
    %v177 = vpack.c.b16 %v176, %v175
    %v195 = vunpack.c.l.b16 %v150
    %v196 = vunpack.c.l.b16 %v151
    %v197 = vunpack.c.l.b16 %v152
    %v198 = vunpack.c.l.b16 %v153
    %v199 = vunpack.c.l.b16 %v154
    %v200 = vunpack.c.l.b16 %v155
    %v201 = vunpack.c.l.b16 %v156
    %v202 = vunpack.c.l.b16 %v157
    %v203 = vunpack.c.l.b16 %v158
    %v204 = vunpack.c.l.b16 %v159
    %v205 = vunpack.c.l.b16 %v160
    %v206 = vunpack.c.l.b16 %v161
    %v207 = vunpack.c.l.b16 %v162
    %v208 = vunpack.c.l.b16 %v163
    %v209 = vunpack.c.l.b16 %v164
    %v210 = vunpack.c.l.b16 %v165
    %v211 = vpack.c.b16 %v196, %v195
    %v212 = vpack.c.b16 %v198, %v197
    %v213 = vpack.c.b16 %v200, %v199
    %v214 = vpack.c.b16 %v202, %v201
    %v215 = vpack.c.b16 %v204, %v203
    %v216 = vpack.c.b16 %v206, %v205
    %v217 = vpack.c.b16 %v208, %v207
    %v218 = vpack.c.b16 %v210, %v209
    %227 = vmatprep.subr.bf16.mxu0 0
    %228 = vmatpush1.bf16.msra.mxu0 %v211
    %229 = vmatprep.subr.bf16.mxu0 0
    %230 = vmatpush1.bf16.msra.mxu0 %v212
    %231 = vmatprep.subr.bf16.mxu0 0
    %232 = vmatpush1.bf16.msra.mxu0 %v213
    %233 = vmatprep.subr.bf16.mxu0 0
    %234 = vmatpush1.bf16.msra.mxu0 %v214
    %235 = vmatprep.subr.bf16.mxu0 0
    %236 = vmatpush1.bf16.msra.mxu0 %v215
    %237 = vmatprep.subr.bf16.mxu0 0
    %238 = vmatpush1.bf16.msra.mxu0 %v216
    %239 = vmatprep.subr.bf16.mxu0 0
    %240 = vmatpush1.bf16.msra.mxu0 %v217
    %241 = vmatprep.subr.bf16.mxu0 0
    %242 = vmatpush1.bf16.msra.mxu0 %v218
    %243 = vmatprep.subr.bf16.mxu0 0
    %244 = vmatpush1.bf16.msra.mxu0 0
    %245 = vmatprep.subr.bf16.mxu0 0
    %246 = vmatpush1.bf16.msra.mxu0 0
    %247 = vmatprep.subr.bf16.mxu0 0
    %248 = vmatpush1.bf16.msra.mxu0 0
    %249 = vmatprep.subr.bf16.mxu0 0
    %250 = vmatpush1.bf16.msra.mxu0 0
    %251 = vmatprep.subr.bf16.mxu0 0
    %252 = vmatpush1.bf16.msra.mxu0 0
    %253 = vmatprep.subr.bf16.mxu0 0
    %254 = vmatpush1.bf16.msra.mxu0 0
    %255 = vmatprep.subr.bf16.mxu0 0
    %256 = vmatpush1.bf16.msra.mxu0 0
    %257 = vmatprep.subr.bf16.mxu0 0
    %258 = vmatpush1.bf16.msra.mxu0 0
    %259 = vmatprep.mubr.bf16.mxu0 0
    %260 = vmatmul.mubr.bf16.gmra.mrb[0].mxu0 %v177
    %v261 = vpop.f32.mrb[0].mxu0
    %v262 = vadd.f32 %v171, %v261
    %v263 = vpop.f32.mrb[0].mxu0
    %v264 = vpop.f32.mrb[0].mxu0
    %v265 = vadd.f32 %v171, %v264
    %v266 = vpop.f32.mrb[0].mxu0
    %267 = vdwg.mxu0
    %vm268 = vcmp.gt.f32.partialorder %v262, 0.0
    %vm269 = vcmp.gt.f32.partialorder %v265, 0.0
    %v270 = vmin.f32 %v262, 0.0
    %v271 = vmin.f32 %v265, 0.0
    %v272 = vmul.f32 %v270, 1.442695
    %v273 = vpow.pop %v272
    %v274 = vmul.f32 %v271, 1.442695
    %v275 = vpow.pop %v274
    %v276 = vsub.f32 %v273, 1.0
    %v277 = vsub.f32 %v275, 1.0
    %v278 = vmul.f32 %v276, 1.6732632
    %v279 = vmul.f32 %v277, 1.6732632
    %v280 = vsel %vm268, %v262, %v278
    %v281 = vsel %vm269, %v265, %v279
    %v282 = vmul.f32 %v280, 1.050701
    %v283 = vmul.f32 %v281, 1.050701
    %v284 = vpack.c.bf16 %v283, %v282
    %v285 = vld [vmem:[#allocation8] sm:$0xf]
    %v286 = vld [vmem:[#allocation8 + $0x4] sm:$0xf]
    %v287 = vld [vmem:[#allocation8 + $0x8] sm:$0xf]
    %v288 = vld [vmem:[#allocation8 + $0xc] sm:$0xf]
    %v289 = vld [vmem:[#allocation8 + $0x10] sm:$0xf]
    %v290 = vld [vmem:[#allocation8 + $0x14] sm:$0xf]
    %v291 = vld [vmem:[#allocation8 + $0x18] sm:$0xf]
    %v292 = vld [vmem:[#allocation8 + $0x1c] sm:$0xf]
    %v293 = vld [vmem:[#allocation8 + $0x20] sm:$0xf]
    %v294 = vld [vmem:[#allocation8 + $0x24] sm:$0xf]
    %v295 = vld [vmem:[#allocation8 + $0x28] sm:$0xf]
    %v296 = vld [vmem:[#allocation8 + $0x2c] sm:$0xf]
    %v297 = vld [vmem:[#allocation8 + $0x30] sm:$0xf]
    %v298 = vld [vmem:[#allocation8 + $0x34] sm:$0xf]
    %v299 = vld [vmem:[#allocation8 + $0x38] sm:$0xf]
    %v300 = vld [vmem:[#allocation8 + $0x3c] sm:$0xf]
    %v301 = vld [vmem:[#allocation10] sm:$0x1]
    %v303 = vlaneseq
    %v304 = vshrl.u32 %v303, 7
    %v305 = vsub.s32 0, %v304
    %v306 = vrot.slane %v301, %v305
    %v324 = vunpack.c.l.b16 %v285
    %v325 = vunpack.c.l.b16 %v286
    %v326 = vunpack.c.l.b16 %v287
    %v327 = vunpack.c.l.b16 %v288
    %v328 = vunpack.c.l.b16 %v289
    %v329 = vunpack.c.l.b16 %v290
    %v330 = vunpack.c.l.b16 %v291
    %v331 = vunpack.c.l.b16 %v292
    %v332 = vunpack.c.l.b16 %v293
    %v333 = vunpack.c.l.b16 %v294
    %v334 = vunpack.c.l.b16 %v295
    %v335 = vunpack.c.l.b16 %v296
    %v336 = vunpack.c.l.b16 %v297
    %v337 = vunpack.c.l.b16 %v298
    %v338 = vunpack.c.l.b16 %v299
    %v339 = vunpack.c.l.b16 %v300
    %v340 = vpack.c.b16 %v325, %v324
    %v341 = vpack.c.b16 %v327, %v326
    %v342 = vpack.c.b16 %v329, %v328
    %v343 = vpack.c.b16 %v331, %v330
    %v344 = vpack.c.b16 %v333, %v332
    %v345 = vpack.c.b16 %v335, %v334
    %v346 = vpack.c.b16 %v337, %v336
    %v347 = vpack.c.b16 %v339, %v338
    %356 = vmatprep.subr.bf16.mxu0 0
    %357 = vmatpush1.bf16.msra.mxu0 %v340
    %358 = vmatprep.subr.bf16.mxu0 0
    %359 = vmatpush1.bf16.msra.mxu0 %v341
    %360 = vmatprep.subr.bf16.mxu0 0
    %361 = vmatpush1.bf16.msra.mxu0 %v342
    %362 = vmatprep.subr.bf16.mxu0 0
    %363 = vmatpush1.bf16.msra.mxu0 %v343
    %364 = vmatprep.subr.bf16.mxu0 0
    %365 = vmatpush1.bf16.msra.mxu0 %v344
    %366 = vmatprep.subr.bf16.mxu0 0
    %367 = vmatpush1.bf16.msra.mxu0 %v345
    %368 = vmatprep.subr.bf16.mxu0 0
    %369 = vmatpush1.bf16.msra.mxu0 %v346
    %370 = vmatprep.subr.bf16.mxu0 0
    %371 = vmatpush1.bf16.msra.mxu0 %v347
    %372 = vmatprep.subr.bf16.mxu0 0
    %373 = vmatpush1.bf16.msra.mxu0 0
    %374 = vmatprep.subr.bf16.mxu0 0
    %375 = vmatpush1.bf16.msra.mxu0 0
    %376 = vmatprep.subr.bf16.mxu0 0
    %377 = vmatpush1.bf16.msra.mxu0 0
    %378 = vmatprep.subr.bf16.mxu0 0
    %379 = vmatpush1.bf16.msra.mxu0 0
    %380 = vmatprep.subr.bf16.mxu0 0
    %381 = vmatpush1.bf16.msra.mxu0 0
    %382 = vmatprep.subr.bf16.mxu0 0
    %383 = vmatpush1.bf16.msra.mxu0 0
    %384 = vmatprep.subr.bf16.mxu0 0
    %385 = vmatpush1.bf16.msra.mxu0 0
    %386 = vmatprep.subr.bf16.mxu0 0
    %387 = vmatpush1.bf16.msra.mxu0 0
    %388 = vmatprep.mubr.bf16.mxu0 0
    %389 = vmatmul.mubr.bf16.gmra.mrb[0].mxu0 %v284
    %v390 = vpop.f32.mrb[0].mxu0
    %v391 = vadd.f32 %v306, %v390
    %v392 = vpop.f32.mrb[0].mxu0
    %v393 = vpop.f32.mrb[0].mxu0
    %v394 = vadd.f32 %v306, %v393
    %v395 = vpop.f32.mrb[0].mxu0
    %396 = vdwg.mxu0
    %vm397 = vcmp.gt.f32.partialorder %v391, 0.0
    %vm398 = vcmp.gt.f32.partialorder %v394, 0.0
    %v399 = vmin.f32 %v391, 0.0
    %v400 = vmin.f32 %v394, 0.0
    %v401 = vmul.f32 %v399, 1.442695
    %v402 = vpow.pop %v401
    %v403 = vmul.f32 %v400, 1.442695
    %v404 = vpow.pop %v403
    %v405 = vsub.f32 %v402, 1.0
    %v406 = vsub.f32 %v404, 1.0
    %v407 = vmul.f32 %v405, 1.6732632
    %v408 = vmul.f32 %v406, 1.6732632
    %v409 = vsel %vm397, %v391, %v407
    %v410 = vsel %vm398, %v394, %v408
    %v411 = vmul.f32 %v409, 1.050701
    %v412 = vmul.f32 %v410, 1.050701
    %v413 = vpack.c.bf16 %v412, %v411
    %v414 = vld [vmem:[#allocation11] sm:$0xf]
    %v415 = vld [vmem:[#allocation11 + $0x4] sm:$0xf]
    %v416 = vld [vmem:[#allocation11 + $0x8] sm:$0xf]
    %v417 = vld [vmem:[#allocation11 + $0xc] sm:$0xf]
    %v418 = vld [vmem:[#allocation11 + $0x10] sm:$0xf]
    %v419 = vld [vmem:[#allocation11 + $0x14] sm:$0xf]
    %v420 = vld [vmem:[#allocation11 + $0x18] sm:$0xf]
    %v421 = vld [vmem:[#allocation11 + $0x1c] sm:$0xf]
    %v422 = vld [vmem:[#allocation11 + $0x20] sm:$0xf]
    %v423 = vld [vmem:[#allocation11 + $0x24] sm:$0xf]
    %v424 = vld [vmem:[#allocation11 + $0x28] sm:$0xf]
    %v425 = vld [vmem:[#allocation11 + $0x2c] sm:$0xf]
    %v426 = vld [vmem:[#allocation11 + $0x30] sm:$0xf]
    %v427 = vld [vmem:[#allocation11 + $0x34] sm:$0xf]
    %v428 = vld [vmem:[#allocation11 + $0x38] sm:$0xf]
    %v429 = vld [vmem:[#allocation11 + $0x3c] sm:$0xf]
    %v430 = vld [vmem:[#allocation13] sm:$0x1]
    %v432 = vlaneseq
    %v433 = vshrl.u32 %v432, 7
    %v434 = vsub.s32 0, %v433
    %v435 = vrot.slane %v430, %v434
    %v453 = vunpack.c.l.b16 %v414
    %v454 = vunpack.c.l.b16 %v415
    %v455 = vunpack.c.l.b16 %v416
    %v456 = vunpack.c.l.b16 %v417
    %v457 = vunpack.c.l.b16 %v418
    %v458 = vunpack.c.l.b16 %v419
    %v459 = vunpack.c.l.b16 %v420
    %v460 = vunpack.c.l.b16 %v421
    %v461 = vunpack.c.l.b16 %v422
    %v462 = vunpack.c.l.b16 %v423
    %v463 = vunpack.c.l.b16 %v424
    %v464 = vunpack.c.l.b16 %v425
    %v465 = vunpack.c.l.b16 %v426
    %v466 = vunpack.c.l.b16 %v427
    %v467 = vunpack.c.l.b16 %v428
    %v468 = vunpack.c.l.b16 %v429
    %v469 = vpack.c.b16 %v454, %v453
    %v470 = vpack.c.b16 %v456, %v455
    %v471 = vpack.c.b16 %v458, %v457
    %v472 = vpack.c.b16 %v460, %v459
    %v473 = vpack.c.b16 %v462, %v461
    %v474 = vpack.c.b16 %v464, %v463
    %v475 = vpack.c.b16 %v466, %v465
    %v476 = vpack.c.b16 %v468, %v467
    %485 = vmatprep.subr.bf16.mxu0 0
    %486 = vmatpush1.bf16.msra.mxu0 %v469
    %487 = vmatprep.subr.bf16.mxu0 0
    %488 = vmatpush1.bf16.msra.mxu0 %v470
    %489 = vmatprep.subr.bf16.mxu0 0
    %490 = vmatpush1.bf16.msra.mxu0 %v471
    %491 = vmatprep.subr.bf16.mxu0 0
    %492 = vmatpush1.bf16.msra.mxu0 %v472
    %493 = vmatprep.subr.bf16.mxu0 0
    %494 = vmatpush1.bf16.msra.mxu0 %v473
    %495 = vmatprep.subr.bf16.mxu0 0
    %496 = vmatpush1.bf16.msra.mxu0 %v474
    %497 = vmatprep.subr.bf16.mxu0 0
    %498 = vmatpush1.bf16.msra.mxu0 %v475
    %499 = vmatprep.subr.bf16.mxu0 0
    %500 = vmatpush1.bf16.msra.mxu0 %v476
    %501 = vmatprep.subr.bf16.mxu0 0
    %502 = vmatpush1.bf16.msra.mxu0 0
    %503 = vmatprep.subr.bf16.mxu0 0
    %504 = vmatpush1.bf16.msra.mxu0 0
    %505 = vmatprep.subr.bf16.mxu0 0
    %506 = vmatpush1.bf16.msra.mxu0 0
    %507 = vmatprep.subr.bf16.mxu0 0
    %508 = vmatpush1.bf16.msra.mxu0 0
    %509 = vmatprep.subr.bf16.mxu0 0
    %510 = vmatpush1.bf16.msra.mxu0 0
    %511 = vmatprep.subr.bf16.mxu0 0
    %512 = vmatpush1.bf16.msra.mxu0 0
    %513 = vmatprep.subr.bf16.mxu0 0
    %514 = vmatpush1.bf16.msra.mxu0 0
    %515 = vmatprep.subr.bf16.mxu0 0
    %516 = vmatpush1.bf16.msra.mxu0 0
    %517 = vmatprep.mubr.bf16.mxu0 0
    %518 = vmatmul.mubr.bf16.gmra.mrb[0].mxu0 %v413
    %v519 = vpop.f32.mrb[0].mxu0
    %v520 = vadd.f32 %v435, %v519
    %v521 = vpop.f32.mrb[0].mxu0
    %v522 = vpop.f32.mrb[0].mxu0
    %v523 = vadd.f32 %v435, %v522
    %v524 = vpop.f32.mrb[0].mxu0
    %525 = vdwg.mxu0
    %vm526 = vcmp.gt.f32.partialorder %v520, 0.0
    %vm527 = vcmp.gt.f32.partialorder %v523, 0.0
    %v528 = vmin.f32 %v520, 0.0
    %v529 = vmin.f32 %v523, 0.0
    %v530 = vmul.f32 %v528, 1.442695
    %v531 = vpow.pop %v530
    %v532 = vmul.f32 %v529, 1.442695
    %v533 = vpow.pop %v532
    %v534 = vsub.f32 %v531, 1.0
    %v535 = vsub.f32 %v533, 1.0
    %v536 = vmul.f32 %v534, 1.6732632
    %v537 = vmul.f32 %v535, 1.6732632
    %v538 = vsel %vm526, %v520, %v536
    %v539 = vsel %vm527, %v523, %v537
    %v540 = vmul.f32 %v538, 1.050701
    %v541 = vmul.f32 %v539, 1.050701
    %v542 = vpack.c.bf16 %v541, %v540
    %v543 = vld [vmem:[#allocation14] sm:$0xf]
    %v544 = vld [vmem:[#allocation14 + $0x4] sm:$0xf]
    %v545 = vld [vmem:[#allocation14 + $0x8] sm:$0xf]
    %v546 = vld [vmem:[#allocation14 + $0xc] sm:$0xf]
    %v547 = vld [vmem:[#allocation14 + $0x10] sm:$0xf]
    %v548 = vld [vmem:[#allocation14 + $0x14] sm:$0xf]
    %v549 = vld [vmem:[#allocation14 + $0x18] sm:$0xf]
    %v550 = vld [vmem:[#allocation14 + $0x1c] sm:$0xf]
    %v551 = vld [vmem:[#allocation14 + $0x20] sm:$0xf]
    %v552 = vld [vmem:[#allocation14 + $0x24] sm:$0xf]
    %v553 = vld [vmem:[#allocation14 + $0x28] sm:$0xf]
    %v554 = vld [vmem:[#allocation14 + $0x2c] sm:$0xf]
    %v555 = vld [vmem:[#allocation14 + $0x30] sm:$0xf]
    %v556 = vld [vmem:[#allocation14 + $0x34] sm:$0xf]
    %v557 = vld [vmem:[#allocation14 + $0x38] sm:$0xf]
    %v558 = vld [vmem:[#allocation14 + $0x3c] sm:$0xf]
    %v559 = vld [vmem:[#allocation16] sm:$0x1]
    %v561 = vlaneseq
    %v562 = vshrl.u32 %v561, 7
    %v563 = vsub.s32 0, %v562
    %v564 = vrot.slane %v559, %v563
    %v582 = vunpack.c.l.b16 %v543
    %v583 = vunpack.c.l.b16 %v544
    %v584 = vunpack.c.l.b16 %v545
    %v585 = vunpack.c.l.b16 %v546
    %v586 = vunpack.c.l.b16 %v547
    %v587 = vunpack.c.l.b16 %v548
    %v588 = vunpack.c.l.b16 %v549
    %v589 = vunpack.c.l.b16 %v550
    %v590 = vunpack.c.l.b16 %v551
    %v591 = vunpack.c.l.b16 %v552
    %v592 = vunpack.c.l.b16 %v553
    %v593 = vunpack.c.l.b16 %v554
    %v594 = vunpack.c.l.b16 %v555
    %v595 = vunpack.c.l.b16 %v556
    %v596 = vunpack.c.l.b16 %v557
    %v597 = vunpack.c.l.b16 %v558
    %v598 = vpack.c.b16 %v583, %v582
    %v599 = vpack.c.b16 %v585, %v584
    %v600 = vpack.c.b16 %v587, %v586
    %v601 = vpack.c.b16 %v589, %v588
    %v602 = vpack.c.b16 %v591, %v590
    %v603 = vpack.c.b16 %v593, %v592
    %v604 = vpack.c.b16 %v595, %v594
    %v605 = vpack.c.b16 %v597, %v596
    %614 = vmatprep.subr.bf16.mxu0 0
    %615 = vmatpush1.bf16.msra.mxu0 %v598
    %616 = vmatprep.subr.bf16.mxu0 0
    %617 = vmatpush1.bf16.msra.mxu0 %v599
    %618 = vmatprep.subr.bf16.mxu0 0
    %619 = vmatpush1.bf16.msra.mxu0 %v600
    %620 = vmatprep.subr.bf16.mxu0 0
    %621 = vmatpush1.bf16.msra.mxu0 %v601
    %622 = vmatprep.subr.bf16.mxu0 0
    %623 = vmatpush1.bf16.msra.mxu0 %v602
    %624 = vmatprep.subr.bf16.mxu0 0
    %625 = vmatpush1.bf16.msra.mxu0 %v603
    %626 = vmatprep.subr.bf16.mxu0 0
    %627 = vmatpush1.bf16.msra.mxu0 %v604
    %628 = vmatprep.subr.bf16.mxu0 0
    %629 = vmatpush1.bf16.msra.mxu0 %v605
    %630 = vmatprep.subr.bf16.mxu0 0
    %631 = vmatpush1.bf16.msra.mxu0 0
    %632 = vmatprep.subr.bf16.mxu0 0
    %633 = vmatpush1.bf16.msra.mxu0 0
    %634 = vmatprep.subr.bf16.mxu0 0
    %635 = vmatpush1.bf16.msra.mxu0 0
    %636 = vmatprep.subr.bf16.mxu0 0
    %637 = vmatpush1.bf16.msra.mxu0 0
    %638 = vmatprep.subr.bf16.mxu0 0
    %639 = vmatpush1.bf16.msra.mxu0 0
    %640 = vmatprep.subr.bf16.mxu0 0
    %641 = vmatpush1.bf16.msra.mxu0 0
    %642 = vmatprep.subr.bf16.mxu0 0
    %643 = vmatpush1.bf16.msra.mxu0 0
    %644 = vmatprep.subr.bf16.mxu0 0
    %645 = vmatpush1.bf16.msra.mxu0 0
    %646 = vmatprep.mubr.bf16.mxu0 0
    %647 = vmatmul.mubr.bf16.gmra.mrb[0].mxu0 %v542
    %v648 = vpop.f32.mrb[0].mxu0
    %v649 = vadd.f32 %v564, %v648
    %v650 = vpop.f32.mrb[0].mxu0
    %v651 = vpop.f32.mrb[0].mxu0
    %v652 = vadd.f32 %v564, %v651
    %v653 = vpop.f32.mrb[0].mxu0
    %654 = vdwg.mxu0
    %655 = vst [vmem:[#allocation17] sm:$0xff] %v649
    %656 = vst [vmem:[#allocation17 + $0x8] sm:$0xff] %v652
    // Predicated region
    $region74: #{tpu_custom_call.1} parent=1 // pred_check
      _
    $region75: #{tpu_custom_call.1} parent=1 // pred_check_branch
      %658 = sbr.rel (0) target = $region77
    $region76: #{tpu_custom_call.1} parent=1 // pred_region
      %s660 = ssub.s32 256, 256
      %661 = vsyncadd [#allocation4], %s660
      %s662 = sshll.u32 [#allocation17], 4
      %s663 = int_to_ptr.vmem [resolvable:$true] %s662
      %668 = dma.vmem_to_hbm [thread:$0]  %s663, 256, %s9, [#allocation4], 128, 128, 8
    $region77: #{tpu_custom_call.1} parent=1 // pred_fallthru
      _
    // Predicated region
    $region78: #{tpu_custom_call.1} parent=1 // pred_check
      _
    $region79: #{tpu_custom_call.1} parent=1 // pred_check_branch
      %670 = sbr.rel (0) target = $region81
    $region80: #{tpu_custom_call.1} parent=1 // pred_region
      %671 = dma.done [#allocation4], 256
    $region81: #{tpu_custom_call.1} parent=1 // pred_fallthru
      _
    %672 = vsyncpa [#allocation3], 1
    %673 = vsyncpa [#allocation6], 1
    %674 = vsyncpa [#allocation9], 1
    %675 = vsyncpa [#allocation12], 1
    %676 = vsyncpa [#allocation15], 1
    %677 = vsyncpa [#allocation4], 1

</llo_original>
